<compile_context>
chip_gen: v6e
topology: v6e:2x2x1
jax: 0.10.0
libtpu: 0.0.40
codegen_flags: <defaults>
</compile_context>

<pallas_src>
import jax
import jax.numpy as jnp
from jax.experimental import pallas as pl
from jax.experimental.pallas import tpu as pltpu

HIDDEN_SIZE = 16
NUM_CLASSES = 2
NUM_LAYERS = 1  # matches the module config (single LSTM layer)


def _ceil8(n):
    return (n + 7) // 8 * 8


def lstm_classifier_kernel(x_ref, p_ref, out_ref):
    """x_ref:   (T*Bp, D)   time-major flattened, batch zero-padded to Bp rows
       p_ref:   (56, 4H)    packed parameter slab (row layout below)
       out_ref: (Bp, 4H)    FC output, lane-padded (valid columns: 0:C)

    Parameter slab rows (all offsets 8-aligned, H=16, D=8):
       [0          : Dp      )  w_ih^T  (D, 4H)   i/f/o columns pre-scaled 0.5
       [Dp         : Dp+Hp   )  w_hh^T  (H, 4H)   i/f/o columns pre-scaled 0.5
       [Dp+Hp      : +1      )  b_ih+b_hh (1, 4H) i/f/o columns pre-scaled 0.5
       [Dp+Hp+8    : +H      )  w_fc^T  (H, 4H)   zero beyond column C
       [Dp+Hp+8+Hp : +1      )  b_fc    (1, 4H)   zero beyond column C
    """
    H = HIDDEN_SIZE
    Bp = out_ref.shape[0]
    T = x_ref.shape[0] // Bp
    D = x_ref.shape[1]

    Dp = _ceil8(D)
    Hp = _ceil8(H)
    r_whh = Dp
    r_b = Dp + Hp
    r_wfc = r_b + 8
    r_bfc = r_wfc + Hp

    w_ih = p_ref[0:D, :]                  # (D, 4H)
    w_hh = p_ref[r_whh:r_whh + H, :]      # (H, 4H)
    b = p_ref[r_b:r_b + 1, :]             # (1, 4H)
    w_fc = p_ref[r_wfc:r_wfc + H, :]      # (H, 4H) zero-padded columns
    b_fc = p_ref[r_bfc:r_bfc + 1, :]      # (1, 4H) zero-padded columns

    # Hoisted input projection for ALL timesteps: one big matmul + one bias
    # broadcast, off the serial recurrence path.
    gates_x = (jnp.dot(x_ref[...], w_ih,
                       preferred_element_type=jnp.float32)
               + b)                                              # (T*Bp, 4H)

    h = jnp.zeros((Bp, H), jnp.float32)
    c = jnp.zeros((Bp, H), jnp.float32)

    # T is small and static -> fully unrolled recurrence.  Each timestep slice
    # of gates_x is an 8-row-aligned vreg (Bp = 8 sublanes).
    for t in range(T):
        gates = gates_x[t * Bp:(t + 1) * Bp, :] + jnp.dot(
            h, w_hh, preferred_element_type=jnp.float32)         # (Bp, 4H)
        # Single full-width tanh; i/f/o pre-activations were pre-scaled by 0.5
        # so sigmoid(z) = 0.5 * (tanh(z/2) + 1) comes from the same pass.
        tg = jnp.tanh(gates)
        sg = 0.5 * tg + 0.5          # one full-width VPU fma, then slice
        i_g = sg[:, 0 * H:1 * H]
        f_g = sg[:, 1 * H:2 * H]
        g_g = tg[:, 2 * H:3 * H]
        o_g = sg[:, 3 * H:4 * H]
        c = f_g * c + i_g * g_g
        h = o_g * jnp.tanh(c)

    # FC on the last timestep's hidden state; lane-padded columns are zero.
    out_ref[...] = (jnp.dot(h, w_fc, preferred_element_type=jnp.float32)
                    + b_fc)


def lstm_classifier_forward(x, params):
    """x: (B, T, D) batch-first (PyTorch convention). Returns (B, C)."""
    w_ih, w_hh, b_ih, b_hh, w_fc, b_fc = params
    B, T, D = x.shape
    H = HIDDEN_SIZE
    C = NUM_CLASSES
    G = 4 * H
    Bp = _ceil8(B)
    Dp = _ceil8(D)
    Hp = _ceil8(H)

    # ---- Layout plumbing in the wrapper (free) ---------------------------
    # Pre-scale the i/f/o gate columns by 0.5 (g column untouched) so the
    # kernel can derive the sigmoid gates from a single tanh pass.
    scale = jnp.full((G,), 0.5, jnp.float32).at[2 * H:3 * H].set(1.0)
    w_ih_t = (jnp.transpose(w_ih).astype(jnp.float32) * scale[None, :])   # (D, 4H)
    w_hh_t = (jnp.transpose(w_hh).astype(jnp.float32) * scale[None, :])   # (H, 4H)
    b_comb = ((b_ih + b_hh).astype(jnp.float32) * scale).reshape(1, G)    # (1, 4H)

    # FC weights/bias lane-padded to 4H so the kernel output is a dense slab.
    w_fc_pad = jnp.zeros((H, G), jnp.float32).at[:, :C].set(
        jnp.transpose(w_fc).astype(jnp.float32))                          # (H, 4H)
    b_fc_pad = jnp.zeros((1, G), jnp.float32).at[0, :C].set(
        b_fc.astype(jnp.float32))                                         # (1, 4H)

    def pad_rows(a, n):
        return jnp.pad(a, ((0, n - a.shape[0]), (0, 0)))

    # One sublane-stacked parameter slab -> single input DMA.
    params_slab = jnp.concatenate([
        pad_rows(w_ih_t, Dp),        # rows [0, Dp)
        pad_rows(w_hh_t, Hp),        # rows [Dp, Dp+Hp)
        pad_rows(b_comb, 8),         # rows [Dp+Hp, Dp+Hp+8)
        pad_rows(w_fc_pad, Hp),      # rows [Dp+Hp+8, Dp+Hp+8+Hp)
        pad_rows(b_fc_pad, 8),       # rows [Dp+Hp+8+Hp, ...)
    ], axis=0)

    # Zero-pad batch to 8 rows (full f32 sublane group), time-major flatten.
    x_pad = jnp.pad(x.astype(jnp.float32), ((0, Bp - B), (0, 0), (0, 0)))
    x_flat = jnp.transpose(x_pad, (1, 0, 2)).reshape(T * Bp, D)

    vmem = pl.BlockSpec(memory_space=pltpu.MemorySpace.VMEM)
    out = pl.pallas_call(
        lstm_classifier_kernel,
        out_shape=jax.ShapeDtypeStruct((Bp, G), jnp.float32),
        in_specs=[vmem, vmem],
        out_specs=vmem,
    )(x_flat, params_slab)
    return out[:B, :C]


def reference_forward(x, params):
    """Pure-JAX reference of the PyTorch forward for validation."""
    w_ih, w_hh, b_ih, b_hh, w_fc, b_fc = params
    B, T, D = x.shape
    H = HIDDEN_SIZE
    h = jnp.zeros((B, H), jnp.float32)
    c = jnp.zeros((B, H), jnp.float32)
    for t in range(T):
        gates = x[:, t, :] @ w_ih.T + h @ w_hh.T + b_ih + b_hh
        i_g = jax.nn.sigmoid(gates[:, 0 * H:1 * H])
        f_g = jax.nn.sigmoid(gates[:, 1 * H:2 * H])
        g_g = jnp.tanh(gates[:, 2 * H:3 * H])
        o_g = jax.nn.sigmoid(gates[:, 3 * H:4 * H])
        c = f_g * c + i_g * g_g
        h = o_g * jnp.tanh(c)
    return h @ w_fc.T + b_fc


def init_params(key, input_size):
    """Deterministic init mimicking PyTorch's uniform(-1/sqrt(H), 1/sqrt(H))."""
    H = HIDDEN_SIZE
    k = 1.0 / jnp.sqrt(jnp.float32(H))
    ks = jax.random.split(key, 6)
    u = lambda kk, shape: jax.random.uniform(kk, shape, jnp.float32, -k, k)
    w_ih = u(ks[0], (4 * H, input_size))
    w_hh = u(ks[1], (4 * H, H))
    b_ih = u(ks[2], (4 * H,))
    b_hh = u(ks[3], (4 * H,))
    w_fc = u(ks[4], (NUM_CLASSES, H))
    b_fc = u(ks[5], (NUM_CLASSES,))
    return (w_ih, w_hh, b_ih, b_hh, w_fc, b_fc)


if __name__ == "__main__":
    B, T, D = 2, 8, 8  # batch, sequence length, input_size (= X_train.shape[2])
    key = jax.random.PRNGKey(0)
    kx, kp = jax.random.split(key)
    x = jax.random.normal(kx, (B, T, D), jnp.float32)
    params = init_params(kp, D)

    out = lstm_classifier_forward(x, params)
    out = jax.block_until_ready(out)

    ref = reference_forward(x, params)
    assert out.shape == (B, NUM_CLASSES)
    # Slightly relaxed tolerance: the kernel derives sigmoid from the EUP tanh
    # (0.5*(tanh(z/2)+1)) while the reference uses jax.nn.sigmoid directly.
    assert jnp.allclose(out, ref, atol=5e-5, rtol=5e-5), (out, ref)
    print("KERNEL_OK")
</pallas_src>

<mosaic_0001>
module attributes {stable_mosaic.version = 11 : i64} {
  func.func @lstm_classifier_kernel(%arg0: memref<64x8xf32, #tpu.memory_space<vmem>>, %arg1: memref<56x64xf32, #tpu.memory_space<vmem>>, %arg2: memref<8x64xf32, #tpu.memory_space<vmem>>) attributes {dimension_semantics = [], scalar_prefetch = 0 : i64, scratch_operands = 0 : i64, tpu.core_type = #tpu.core_type<tc>} {
    %c0 = arith.constant 0 : index
    %c0_0 = arith.constant 0 : index
    %0 = vector.load %arg1[%c0, %c0_0] : memref<56x64xf32, #tpu.memory_space<vmem>>, vector<8x64xf32>
    %c8 = arith.constant 8 : index
    %c0_1 = arith.constant 0 : index
    %1 = vector.load %arg1[%c8, %c0_1] : memref<56x64xf32, #tpu.memory_space<vmem>>, vector<16x64xf32>
    %c24 = arith.constant 24 : index
    %c0_2 = arith.constant 0 : index
    %2 = vector.load %arg1[%c24, %c0_2] : memref<56x64xf32, #tpu.memory_space<vmem>>, vector<1x64xf32>
    %c32 = arith.constant 32 : index
    %c0_3 = arith.constant 0 : index
    %3 = vector.load %arg1[%c32, %c0_3] : memref<56x64xf32, #tpu.memory_space<vmem>>, vector<16x64xf32>
    %c48 = arith.constant 48 : index
    %c0_4 = arith.constant 0 : index
    %4 = vector.load %arg1[%c48, %c0_4] : memref<56x64xf32, #tpu.memory_space<vmem>>, vector<1x64xf32>
    %c0_5 = arith.constant 0 : index
    %c0_6 = arith.constant 0 : index
    %5 = vector.load %arg0[%c0_5, %c0_6] : memref<64x8xf32, #tpu.memory_space<vmem>>, vector<64x8xf32>
    %cst = arith.constant dense<0.000000e+00> : vector<64x64xf32>
    %6 = tpu.matmul %5, %0, %cst {dimension_numbers = #tpu.dot_dimension_numbers<[1], [0], [0], [1], [0, 0, 1, 1], [], []>} : vector<64x8xf32>, vector<8x64xf32>, vector<64x64xf32> -> vector<64x64xf32>
    %7 = vector.broadcast %2 : vector<1x64xf32> to vector<64x64xf32>
    %8 = arith.addf %6, %7 : vector<64x64xf32>
    %cst_7 = arith.constant 0.000000e+00 : f32
    %9 = vector.broadcast %cst_7 : f32 to vector<8x16xf32>
    %cst_8 = arith.constant 0.000000e+00 : f32
    %10 = vector.broadcast %cst_8 : f32 to vector<8x16xf32>
    %11 = vector.extract_strided_slice %8 {offsets = [0, 0], sizes = [8, 64], strides = [1, 1]} : vector<64x64xf32> to vector<8x64xf32>
    %cst_9 = arith.constant dense<0.000000e+00> : vector<8x64xf32>
    %12 = tpu.matmul %9, %1, %cst_9 {dimension_numbers = #tpu.dot_dimension_numbers<[1], [0], [0], [1], [0, 0, 1, 1], [], []>} : vector<8x16xf32>, vector<16x64xf32>, vector<8x64xf32> -> vector<8x64xf32>
    %13 = arith.addf %11, %12 : vector<8x64xf32>
    %14 = math.tanh %13 : vector<8x64xf32>
    %cst_10 = arith.constant 5.000000e-01 : f32
    %15 = vector.broadcast %cst_10 : f32 to vector<8x64xf32>
    %16 = arith.mulf %15, %14 : vector<8x64xf32>
    %cst_11 = arith.constant 5.000000e-01 : f32
    %17 = vector.broadcast %cst_11 : f32 to vector<8x64xf32>
    %18 = arith.addf %16, %17 : vector<8x64xf32>
    %19 = vector.extract_strided_slice %18 {offsets = [0, 0], sizes = [8, 16], strides = [1, 1]} : vector<8x64xf32> to vector<8x16xf32>
    %20 = vector.extract_strided_slice %18 {offsets = [0, 16], sizes = [8, 16], strides = [1, 1]} : vector<8x64xf32> to vector<8x16xf32>
    %21 = vector.extract_strided_slice %14 {offsets = [0, 32], sizes = [8, 16], strides = [1, 1]} : vector<8x64xf32> to vector<8x16xf32>
    %22 = vector.extract_strided_slice %18 {offsets = [0, 48], sizes = [8, 16], strides = [1, 1]} : vector<8x64xf32> to vector<8x16xf32>
    %23 = arith.mulf %20, %10 : vector<8x16xf32>
    %24 = arith.mulf %19, %21 : vector<8x16xf32>
    %25 = arith.addf %23, %24 : vector<8x16xf32>
    %26 = math.tanh %25 : vector<8x16xf32>
    %27 = arith.mulf %22, %26 : vector<8x16xf32>
    %28 = vector.extract_strided_slice %8 {offsets = [8, 0], sizes = [8, 64], strides = [1, 1]} : vector<64x64xf32> to vector<8x64xf32>
    %cst_12 = arith.constant dense<0.000000e+00> : vector<8x64xf32>
    %29 = tpu.matmul %27, %1, %cst_12 {dimension_numbers = #tpu.dot_dimension_numbers<[1], [0], [0], [1], [0, 0, 1, 1], [], []>} : vector<8x16xf32>, vector<16x64xf32>, vector<8x64xf32> -> vector<8x64xf32>
    %30 = arith.addf %28, %29 : vector<8x64xf32>
    %31 = math.tanh %30 : vector<8x64xf32>
    %cst_13 = arith.constant 5.000000e-01 : f32
    %32 = vector.broadcast %cst_13 : f32 to vector<8x64xf32>
    %33 = arith.mulf %32, %31 : vector<8x64xf32>
    %cst_14 = arith.constant 5.000000e-01 : f32
    %34 = vector.broadcast %cst_14 : f32 to vector<8x64xf32>
    %35 = arith.addf %33, %34 : vector<8x64xf32>
    %36 = vector.extract_strided_slice %35 {offsets = [0, 0], sizes = [8, 16], strides = [1, 1]} : vector<8x64xf32> to vector<8x16xf32>
    %37 = vector.extract_strided_slice %35 {offsets = [0, 16], sizes = [8, 16], strides = [1, 1]} : vector<8x64xf32> to vector<8x16xf32>
    %38 = vector.extract_strided_slice %31 {offsets = [0, 32], sizes = [8, 16], strides = [1, 1]} : vector<8x64xf32> to vector<8x16xf32>
    %39 = vector.extract_strided_slice %35 {offsets = [0, 48], sizes = [8, 16], strides = [1, 1]} : vector<8x64xf32> to vector<8x16xf32>
    %40 = arith.mulf %37, %25 : vector<8x16xf32>
    %41 = arith.mulf %36, %38 : vector<8x16xf32>
    %42 = arith.addf %40, %41 : vector<8x16xf32>
    %43 = math.tanh %42 : vector<8x16xf32>
    %44 = arith.mulf %39, %43 : vector<8x16xf32>
    %45 = vector.extract_strided_slice %8 {offsets = [16, 0], sizes = [8, 64], strides = [1, 1]} : vector<64x64xf32> to vector<8x64xf32>
    %cst_15 = arith.constant dense<0.000000e+00> : vector<8x64xf32>
    %46 = tpu.matmul %44, %1, %cst_15 {dimension_numbers = #tpu.dot_dimension_numbers<[1], [0], [0], [1], [0, 0, 1, 1], [], []>} : vector<8x16xf32>, vector<16x64xf32>, vector<8x64xf32> -> vector<8x64xf32>
    %47 = arith.addf %45, %46 : vector<8x64xf32>
    %48 = math.tanh %47 : vector<8x64xf32>
    %cst_16 = arith.constant 5.000000e-01 : f32
    %49 = vector.broadcast %cst_16 : f32 to vector<8x64xf32>
    %50 = arith.mulf %49, %48 : vector<8x64xf32>
    %cst_17 = arith.constant 5.000000e-01 : f32
    %51 = vector.broadcast %cst_17 : f32 to vector<8x64xf32>
    %52 = arith.addf %50, %51 : vector<8x64xf32>
    %53 = vector.extract_strided_slice %52 {offsets = [0, 0], sizes = [8, 16], strides = [1, 1]} : vector<8x64xf32> to vector<8x16xf32>
    %54 = vector.extract_strided_slice %52 {offsets = [0, 16], sizes = [8, 16], strides = [1, 1]} : vector<8x64xf32> to vector<8x16xf32>
    %55 = vector.extract_strided_slice %48 {offsets = [0, 32], sizes = [8, 16], strides = [1, 1]} : vector<8x64xf32> to vector<8x16xf32>
    %56 = vector.extract_strided_slice %52 {offsets = [0, 48], sizes = [8, 16], strides = [1, 1]} : vector<8x64xf32> to vector<8x16xf32>
    %57 = arith.mulf %54, %42 : vector<8x16xf32>
    %58 = arith.mulf %53, %55 : vector<8x16xf32>
    %59 = arith.addf %57, %58 : vector<8x16xf32>
    %60 = math.tanh %59 : vector<8x16xf32>
    %61 = arith.mulf %56, %60 : vector<8x16xf32>
    %62 = vector.extract_strided_slice %8 {offsets = [24, 0], sizes = [8, 64], strides = [1, 1]} : vector<64x64xf32> to vector<8x64xf32>
    %cst_18 = arith.constant dense<0.000000e+00> : vector<8x64xf32>
    %63 = tpu.matmul %61, %1, %cst_18 {dimension_numbers = #tpu.dot_dimension_numbers<[1], [0], [0], [1], [0, 0, 1, 1], [], []>} : vector<8x16xf32>, vector<16x64xf32>, vector<8x64xf32> -> vector<8x64xf32>
    %64 = arith.addf %62, %63 : vector<8x64xf32>
    %65 = math.tanh %64 : vector<8x64xf32>
    %cst_19 = arith.constant 5.000000e-01 : f32
    %66 = vector.broadcast %cst_19 : f32 to vector<8x64xf32>
    %67 = arith.mulf %66, %65 : vector<8x64xf32>
    %cst_20 = arith.constant 5.000000e-01 : f32
    %68 = vector.broadcast %cst_20 : f32 to vector<8x64xf32>
    %69 = arith.addf %67, %68 : vector<8x64xf32>
    %70 = vector.extract_strided_slice %69 {offsets = [0, 0], sizes = [8, 16], strides = [1, 1]} : vector<8x64xf32> to vector<8x16xf32>
    %71 = vector.extract_strided_slice %69 {offsets = [0, 16], sizes = [8, 16], strides = [1, 1]} : vector<8x64xf32> to vector<8x16xf32>
    %72 = vector.extract_strided_slice %65 {offsets = [0, 32], sizes = [8, 16], strides = [1, 1]} : vector<8x64xf32> to vector<8x16xf32>
    %73 = vector.extract_strided_slice %69 {offsets = [0, 48], sizes = [8, 16], strides = [1, 1]} : vector<8x64xf32> to vector<8x16xf32>
    %74 = arith.mulf %71, %59 : vector<8x16xf32>
    %75 = arith.mulf %70, %72 : vector<8x16xf32>
    %76 = arith.addf %74, %75 : vector<8x16xf32>
    %77 = math.tanh %76 : vector<8x16xf32>
    %78 = arith.mulf %73, %77 : vector<8x16xf32>
    %79 = vector.extract_strided_slice %8 {offsets = [32, 0], sizes = [8, 64], strides = [1, 1]} : vector<64x64xf32> to vector<8x64xf32>
    %cst_21 = arith.constant dense<0.000000e+00> : vector<8x64xf32>
    %80 = tpu.matmul %78, %1, %cst_21 {dimension_numbers = #tpu.dot_dimension_numbers<[1], [0], [0], [1], [0, 0, 1, 1], [], []>} : vector<8x16xf32>, vector<16x64xf32>, vector<8x64xf32> -> vector<8x64xf32>
    %81 = arith.addf %79, %80 : vector<8x64xf32>
    %82 = math.tanh %81 : vector<8x64xf32>
    %cst_22 = arith.constant 5.000000e-01 : f32
    %83 = vector.broadcast %cst_22 : f32 to vector<8x64xf32>
    %84 = arith.mulf %83, %82 : vector<8x64xf32>
    %cst_23 = arith.constant 5.000000e-01 : f32
    %85 = vector.broadcast %cst_23 : f32 to vector<8x64xf32>
    %86 = arith.addf %84, %85 : vector<8x64xf32>
    %87 = vector.extract_strided_slice %86 {offsets = [0, 0], sizes = [8, 16], strides = [1, 1]} : vector<8x64xf32> to vector<8x16xf32>
    %88 = vector.extract_strided_slice %86 {offsets = [0, 16], sizes = [8, 16], strides = [1, 1]} : vector<8x64xf32> to vector<8x16xf32>
    %89 = vector.extract_strided_slice %82 {offsets = [0, 32], sizes = [8, 16], strides = [1, 1]} : vector<8x64xf32> to vector<8x16xf32>
    %90 = vector.extract_strided_slice %86 {offsets = [0, 48], sizes = [8, 16], strides = [1, 1]} : vector<8x64xf32> to vector<8x16xf32>
    %91 = arith.mulf %88, %76 : vector<8x16xf32>
    %92 = arith.mulf %87, %89 : vector<8x16xf32>
    %93 = arith.addf %91, %92 : vector<8x16xf32>
    %94 = math.tanh %93 : vector<8x16xf32>
    %95 = arith.mulf %90, %94 : vector<8x16xf32>
    %96 = vector.extract_strided_slice %8 {offsets = [40, 0], sizes = [8, 64], strides = [1, 1]} : vector<64x64xf32> to vector<8x64xf32>
    %cst_24 = arith.constant dense<0.000000e+00> : vector<8x64xf32>
    %97 = tpu.matmul %95, %1, %cst_24 {dimension_numbers = #tpu.dot_dimension_numbers<[1], [0], [0], [1], [0, 0, 1, 1], [], []>} : vector<8x16xf32>, vector<16x64xf32>, vector<8x64xf32> -> vector<8x64xf32>
    %98 = arith.addf %96, %97 : vector<8x64xf32>
    %99 = math.tanh %98 : vector<8x64xf32>
    %cst_25 = arith.constant 5.000000e-01 : f32
    %100 = vector.broadcast %cst_25 : f32 to vector<8x64xf32>
    %101 = arith.mulf %100, %99 : vector<8x64xf32>
    %cst_26 = arith.constant 5.000000e-01 : f32
    %102 = vector.broadcast %cst_26 : f32 to vector<8x64xf32>
    %103 = arith.addf %101, %102 : vector<8x64xf32>
    %104 = vector.extract_strided_slice %103 {offsets = [0, 0], sizes = [8, 16], strides = [1, 1]} : vector<8x64xf32> to vector<8x16xf32>
    %105 = vector.extract_strided_slice %103 {offsets = [0, 16], sizes = [8, 16], strides = [1, 1]} : vector<8x64xf32> to vector<8x16xf32>
    %106 = vector.extract_strided_slice %99 {offsets = [0, 32], sizes = [8, 16], strides = [1, 1]} : vector<8x64xf32> to vector<8x16xf32>
    %107 = vector.extract_strided_slice %103 {offsets = [0, 48], sizes = [8, 16], strides = [1, 1]} : vector<8x64xf32> to vector<8x16xf32>
    %108 = arith.mulf %105, %93 : vector<8x16xf32>
    %109 = arith.mulf %104, %106 : vector<8x16xf32>
    %110 = arith.addf %108, %109 : vector<8x16xf32>
    %111 = math.tanh %110 : vector<8x16xf32>
    %112 = arith.mulf %107, %111 : vector<8x16xf32>
    %113 = vector.extract_strided_slice %8 {offsets = [48, 0], sizes = [8, 64], strides = [1, 1]} : vector<64x64xf32> to vector<8x64xf32>
    %cst_27 = arith.constant dense<0.000000e+00> : vector<8x64xf32>
    %114 = tpu.matmul %112, %1, %cst_27 {dimension_numbers = #tpu.dot_dimension_numbers<[1], [0], [0], [1], [0, 0, 1, 1], [], []>} : vector<8x16xf32>, vector<16x64xf32>, vector<8x64xf32> -> vector<8x64xf32>
    %115 = arith.addf %113, %114 : vector<8x64xf32>
    %116 = math.tanh %115 : vector<8x64xf32>
    %cst_28 = arith.constant 5.000000e-01 : f32
    %117 = vector.broadcast %cst_28 : f32 to vector<8x64xf32>
    %118 = arith.mulf %117, %116 : vector<8x64xf32>
    %cst_29 = arith.constant 5.000000e-01 : f32
    %119 = vector.broadcast %cst_29 : f32 to vector<8x64xf32>
    %120 = arith.addf %118, %119 : vector<8x64xf32>
    %121 = vector.extract_strided_slice %120 {offsets = [0, 0], sizes = [8, 16], strides = [1, 1]} : vector<8x64xf32> to vector<8x16xf32>
    %122 = vector.extract_strided_slice %120 {offsets = [0, 16], sizes = [8, 16], strides = [1, 1]} : vector<8x64xf32> to vector<8x16xf32>
    %123 = vector.extract_strided_slice %116 {offsets = [0, 32], sizes = [8, 16], strides = [1, 1]} : vector<8x64xf32> to vector<8x16xf32>
    %124 = vector.extract_strided_slice %120 {offsets = [0, 48], sizes = [8, 16], strides = [1, 1]} : vector<8x64xf32> to vector<8x16xf32>
    %125 = arith.mulf %122, %110 : vector<8x16xf32>
    %126 = arith.mulf %121, %123 : vector<8x16xf32>
    %127 = arith.addf %125, %126 : vector<8x16xf32>
    %128 = math.tanh %127 : vector<8x16xf32>
    %129 = arith.mulf %124, %128 : vector<8x16xf32>
    %130 = vector.extract_strided_slice %8 {offsets = [56, 0], sizes = [8, 64], strides = [1, 1]} : vector<64x64xf32> to vector<8x64xf32>
    %cst_30 = arith.constant dense<0.000000e+00> : vector<8x64xf32>
    %131 = tpu.matmul %129, %1, %cst_30 {dimension_numbers = #tpu.dot_dimension_numbers<[1], [0], [0], [1], [0, 0, 1, 1], [], []>} : vector<8x16xf32>, vector<16x64xf32>, vector<8x64xf32> -> vector<8x64xf32>
    %132 = arith.addf %130, %131 : vector<8x64xf32>
    %133 = math.tanh %132 : vector<8x64xf32>
    %cst_31 = arith.constant 5.000000e-01 : f32
    %134 = vector.broadcast %cst_31 : f32 to vector<8x64xf32>
    %135 = arith.mulf %134, %133 : vector<8x64xf32>
    %cst_32 = arith.constant 5.000000e-01 : f32
    %136 = vector.broadcast %cst_32 : f32 to vector<8x64xf32>
    %137 = arith.addf %135, %136 : vector<8x64xf32>
    %138 = vector.extract_strided_slice %137 {offsets = [0, 0], sizes = [8, 16], strides = [1, 1]} : vector<8x64xf32> to vector<8x16xf32>
    %139 = vector.extract_strided_slice %137 {offsets = [0, 16], sizes = [8, 16], strides = [1, 1]} : vector<8x64xf32> to vector<8x16xf32>
    %140 = vector.extract_strided_slice %133 {offsets = [0, 32], sizes = [8, 16], strides = [1, 1]} : vector<8x64xf32> to vector<8x16xf32>
    %141 = vector.extract_strided_slice %137 {offsets = [0, 48], sizes = [8, 16], strides = [1, 1]} : vector<8x64xf32> to vector<8x16xf32>
    %142 = arith.mulf %139, %127 : vector<8x16xf32>
    %143 = arith.mulf %138, %140 : vector<8x16xf32>
    %144 = arith.addf %142, %143 : vector<8x16xf32>
    %145 = math.tanh %144 : vector<8x16xf32>
    %146 = arith.mulf %141, %145 : vector<8x16xf32>
    %cst_33 = arith.constant dense<0.000000e+00> : vector<8x64xf32>
    %147 = tpu.matmul %146, %3, %cst_33 {dimension_numbers = #tpu.dot_dimension_numbers<[1], [0], [0], [1], [0, 0, 1, 1], [], []>} : vector<8x16xf32>, vector<16x64xf32>, vector<8x64xf32> -> vector<8x64xf32>
    %148 = vector.broadcast %4 : vector<1x64xf32> to vector<8x64xf32>
    %149 = arith.addf %147, %148 : vector<8x64xf32>
    %c0_34 = arith.constant 0 : index
    %c0_35 = arith.constant 0 : index
    %150 = vector.load %arg2[%c0_34, %c0_35] : memref<8x64xf32, #tpu.memory_space<vmem>>, vector<8x64xf32>
    tpu.vector_store %arg2[%c0_34, %c0_35], %149 {strides = array<i32>} : memref<8x64xf32, #tpu.memory_space<vmem>>, vector<8x64xf32>,
    return
  }
}

</mosaic_0001>

<llo_original>
// kernel: tpu_custom_call.1
$region0: #{tpu_custom_call.1}
  #allocation0 [shape = 'u32[]', space=smem, size = 0x4, offset = 0x4, fixed_abs, tag = 'smem constant byte address 0x4 - core index']
  #allocation1 [shape = 'u32[144,128]{1,0:T(1,128)}', space=vmem, size = 0x12000, scoped, tag = 'internal scratch']
  %s0 = inlined_call_operand.vmem [shape: f32[64,8], index: 0, kind: input, shape index: {}]
  %s1 = inlined_call_operand.vmem [shape: f32[56,64], index: 1, kind: input, shape index: {}]
  %s2 = inlined_call_operand.hbm [shape: f32[8,64], index: 2, kind: output, shape index: {}]
  %s3 = sld [smem:[#allocation0]]
  $region18: #{tpu_custom_call.1} parent=0
    _
  %s5 = ssub.s32 1, %s3
  %s6 = scalar_select 0, %s5, %s3
  $region1: #{tpu_custom_call.1} parent=0
    #allocation2 [shape = 'u8[4096]{0}', space=vmem, size = 0x1000, scoped, tag = 'output window, operand 0, single buffered']
    #allocation3 [shape = 's32[1]{0}', space=sflag, size = 0x4, scoped, tag = 'scoped memory for tpu_custom_call.1']
    %7 = vsyncpa [#allocation3], 0
    // Predicated region
    $region2: #{tpu_custom_call.1} parent=1 // pred_check
      _
    $region3: #{tpu_custom_call.1} parent=1 // pred_check_branch
      %9 = sbr.rel (0) target = $region5
    $region4: #{tpu_custom_call.1} parent=1 // pred_region
      _
    $region5: #{tpu_custom_call.1} parent=1 // pred_fallthru
      _
    // Predicated region
    $region6: #{tpu_custom_call.1} parent=1 // pred_check
      _
    $region7: #{tpu_custom_call.1} parent=1 // pred_check_branch
      %11 = sbr.rel (0) target = $region9
    $region8: #{tpu_custom_call.1} parent=1 // pred_region
      _
    $region9: #{tpu_custom_call.1} parent=1 // pred_fallthru
      _
    %v12 = vld [vmem:[%s1] sm:$0xff]
    %v13 = vld [vmem:[%s1 + $0x8] sm:$0xff]
    %v14 = vld [vmem:[%s1 + $0x10] sm:$0xff]
    %v15 = vld [vmem:[%s1 + $0x18] sm:$0x1]
    %v16 = vld [vmem:[%s1 + $0x20] sm:$0xff]
    %v17 = vld [vmem:[%s1 + $0x28] sm:$0xff]
    %v18 = vld [vmem:[%s1 + $0x30] sm:$0x1]
    %v19 = vld [vmem:[%s0] sm:$0xff]
    %v20 = vld [vmem:[%s0 + $0x8] sm:$0xff]
    %v21 = vld [vmem:[%s0 + $0x10] sm:$0xff]
    %v22 = vld [vmem:[%s0 + $0x18] sm:$0xff]
    %v23 = vld [vmem:[%s0 + $0x20] sm:$0xff]
    %v24 = vld [vmem:[%s0 + $0x28] sm:$0xff]
    %v25 = vld [vmem:[%s0 + $0x30] sm:$0xff]
    %v26 = vld [vmem:[%s0 + $0x38] sm:$0xff]
    %v27 = vlaneseq
    %v28 = vshrl.u32 %v27, 7
    %v29 = vsub.s32 0, %v28
    %v30 = vrot.slane %v15, %v29
    %vm31 = vcmask 64512
    %v33 = vsel %vm31, %v19, 0
    %v36 = vsel %vm31, %v20, 0
    %v39 = vsel %vm31, %v21, 0
    %v42 = vsel %vm31, %v22, 0
    %v45 = vsel %vm31, %v23, 0
    %v48 = vsel %vm31, %v24, 0
    %v51 = vsel %vm31, %v25, 0
    %v54 = vsel %vm31, %v26, 0
    %56 = vmatprep.subr.mxu0 0.0
    %57 = vmatpush1.msra.mxu0 0.0
    %58 = vmatprep.subr.mxu0 0.0
    %59 = vmatpush1.msra.mxu0 0.0
    %60 = vmatprep.subr.mxu0 0.0
    %61 = vmatpush1.msra.mxu0 0.0
    %62 = vmatprep.subr.mxu0 0.0
    %63 = vmatpush1.msra.mxu0 0.0
    %64 = vmatprep.subr.mxu0 0.0
    %65 = vmatpush1.msra.mxu0 0.0
    %66 = vmatprep.subr.mxu0 0.0
    %67 = vmatpush1.msra.mxu0 0.0
    %68 = vmatprep.subr.mxu0 0.0
    %69 = vmatpush1.msra.mxu0 0.0
    %70 = vmatprep.subr.mxu0 0.0
    %71 = vmatpush1.msra.mxu0 0.0
    %72 = vmatprep.subr.mxu0 0.0
    %73 = vmatpush1.msra.mxu0 0.0
    %74 = vmatprep.subr.mxu0 0.0
    %75 = vmatpush1.msra.mxu0 0.0
    %76 = vmatprep.subr.mxu0 0.0
    %77 = vmatpush1.msra.mxu0 0.0
    %78 = vmatprep.subr.mxu0 0.0
    %79 = vmatpush1.msra.mxu0 0.0
    %80 = vmatprep.subr.mxu0 0.0
    %81 = vmatpush1.msra.mxu0 0.0
    %82 = vmatprep.subr.mxu0 0.0
    %83 = vmatpush1.msra.mxu0 0.0
    %84 = vmatprep.subr.mxu0 0.0
    %85 = vmatpush1.msra.mxu0 0.0
    %86 = vmatprep.subr.mxu0 0.0
    %87 = vmatpush1.msra.mxu0 %v12
    %88 = vmatprep.subr.mxu0 0.0
    %89 = vmatpush2.msra.mxu0 0.0
    %90 = vmatprep.subr.mxu0 0.0
    %91 = vmatpush2.msra.mxu0 0.0
    %92 = vmatprep.subr.mxu0 0.0
    %93 = vmatpush2.msra.mxu0 0.0
    %94 = vmatprep.subr.mxu0 0.0
    %95 = vmatpush2.msra.mxu0 0.0
    %96 = vmatprep.subr.mxu0 0.0
    %97 = vmatpush2.msra.mxu0 0.0
    %98 = vmatprep.subr.mxu0 0.0
    %99 = vmatpush2.msra.mxu0 0.0
    %100 = vmatprep.subr.mxu0 0.0
    %101 = vmatpush2.msra.mxu0 0.0
    %102 = vmatprep.subr.mxu0 0.0
    %103 = vmatpush2.msra.mxu0 0.0
    %104 = vmatprep.subr.mxu0 0.0
    %105 = vmatpush2.msra.mxu0 0.0
    %106 = vmatprep.subr.mxu0 0.0
    %107 = vmatpush2.msra.mxu0 0.0
    %108 = vmatprep.subr.mxu0 0.0
    %109 = vmatpush2.msra.mxu0 0.0
    %110 = vmatprep.subr.mxu0 0.0
    %111 = vmatpush2.msra.mxu0 0.0
    %112 = vmatprep.subr.mxu0 0.0
    %113 = vmatpush2.msra.mxu0 0.0
    %114 = vmatprep.subr.mxu0 0.0
    %115 = vmatpush2.msra.mxu0 0.0
    %116 = vmatprep.subr.mxu0 0.0
    %117 = vmatpush2.msra.mxu0 0.0
    %118 = vmatprep.subr.mxu0 0.0
    %119 = vmatpush2.msra.mxu0 0.0
    %120 = vmatprep.mubr.f32.mxu0 0.0
    %121 = vmatmul.mubr.f32.gmra.mxu0 %v33
    %v122 = vpop.f32.mrf.mxu0
    %v123 = vadd.f32 %v30, %v122
    %v124 = vpop.f32.mrf.mxu0
    %125 = vmatprep.mubr.f32.mxu0 0.0
    %126 = vmatmul.mubr.f32.gmra.mxu0 %v36
    %v127 = vpop.f32.mrf.mxu0
    %v128 = vadd.f32 %v30, %v127
    %v129 = vpop.f32.mrf.mxu0
    %130 = vmatprep.mubr.f32.mxu0 0.0
    %131 = vmatmul.mubr.f32.gmra.mxu0 %v39
    %v132 = vpop.f32.mrf.mxu0
    %v133 = vadd.f32 %v30, %v132
    %v134 = vpop.f32.mrf.mxu0
    %135 = vmatprep.mubr.f32.mxu0 0.0
    %136 = vmatmul.mubr.f32.gmra.mxu0 %v42
    %v137 = vpop.f32.mrf.mxu0
    %v138 = vadd.f32 %v30, %v137
    %v139 = vpop.f32.mrf.mxu0
    %140 = vmatprep.mubr.f32.mxu0 0.0
    %141 = vmatmul.mubr.f32.gmra.mxu0 %v45
    %v142 = vpop.f32.mrf.mxu0
    %v143 = vadd.f32 %v30, %v142
    %v144 = vpop.f32.mrf.mxu0
    %145 = vmatprep.mubr.f32.mxu0 0.0
    %146 = vmatmul.mubr.f32.gmra.mxu0 %v48
    %v147 = vpop.f32.mrf.mxu0
    %v148 = vadd.f32 %v30, %v147
    %v149 = vpop.f32.mrf.mxu0
    %150 = vmatprep.mubr.f32.mxu0 0.0
    %151 = vmatmul.mubr.f32.gmra.mxu0 %v51
    %v152 = vpop.f32.mrf.mxu0
    %v153 = vadd.f32 %v30, %v152
    %v154 = vpop.f32.mrf.mxu0
    %155 = vmatprep.mubr.f32.mxu0 0.0
    %156 = vmatmul.mubr.f32.gmra.mxu0 %v54
    %v157 = vpop.f32.mrf.mxu0
    %v158 = vadd.f32 %v30, %v157
    %v159 = vpop.f32.mrf.mxu0
    %160 = vdwg.mxu0
    %vm161 = vcmask 130048
    %v163 = vsel %vm161, 0.0, 0
    %165 = vmatprep.subr.mxu0 0.0
    %166 = vmatpush1.msra.mxu0 0.0
    %167 = vmatprep.subr.mxu0 0.0
    %168 = vmatpush1.msra.mxu0 0.0
    %169 = vmatprep.subr.mxu0 0.0
    %170 = vmatpush1.msra.mxu0 0.0
    %171 = vmatprep.subr.mxu0 0.0
    %172 = vmatpush1.msra.mxu0 0.0
    %173 = vmatprep.subr.mxu0 0.0
    %174 = vmatpush1.msra.mxu0 0.0
    %175 = vmatprep.subr.mxu0 0.0
    %176 = vmatpush1.msra.mxu0 0.0
    %177 = vmatprep.subr.mxu0 0.0
    %178 = vmatpush1.msra.mxu0 0.0
    %179 = vmatprep.subr.mxu0 0.0
    %180 = vmatpush1.msra.mxu0 0.0
    %181 = vmatprep.subr.mxu0 0.0
    %182 = vmatpush1.msra.mxu0 0.0
    %183 = vmatprep.subr.mxu0 0.0
    %184 = vmatpush1.msra.mxu0 0.0
    %185 = vmatprep.subr.mxu0 0.0
    %186 = vmatpush1.msra.mxu0 0.0
    %187 = vmatprep.subr.mxu0 0.0
    %188 = vmatpush1.msra.mxu0 0.0
    %189 = vmatprep.subr.mxu0 0.0
    %190 = vmatpush1.msra.mxu0 0.0
    %191 = vmatprep.subr.mxu0 0.0
    %192 = vmatpush1.msra.mxu0 0.0
    %193 = vmatprep.subr.mxu0 0.0
    %194 = vmatpush1.msra.mxu0 %v14
    %195 = vmatprep.subr.mxu0 0.0
    %196 = vmatpush1.msra.mxu0 %v13
    %197 = vmatprep.subr.mxu0 0.0
    %198 = vmatpush2.msra.mxu0 0.0
    %199 = vmatprep.subr.mxu0 0.0
    %200 = vmatpush2.msra.mxu0 0.0
    %201 = vmatprep.subr.mxu0 0.0
    %202 = vmatpush2.msra.mxu0 0.0
    %203 = vmatprep.subr.mxu0 0.0
    %204 = vmatpush2.msra.mxu0 0.0
    %205 = vmatprep.subr.mxu0 0.0
    %206 = vmatpush2.msra.mxu0 0.0
    %207 = vmatprep.subr.mxu0 0.0
    %208 = vmatpush2.msra.mxu0 0.0
    %209 = vmatprep.subr.mxu0 0.0
    %210 = vmatpush2.msra.mxu0 0.0
    %211 = vmatprep.subr.mxu0 0.0
    %212 = vmatpush2.msra.mxu0 0.0
    %213 = vmatprep.subr.mxu0 0.0
    %214 = vmatpush2.msra.mxu0 0.0
    %215 = vmatprep.subr.mxu0 0.0
    %216 = vmatpush2.msra.mxu0 0.0
    %217 = vmatprep.subr.mxu0 0.0
    %218 = vmatpush2.msra.mxu0 0.0
    %219 = vmatprep.subr.mxu0 0.0
    %220 = vmatpush2.msra.mxu0 0.0
    %221 = vmatprep.subr.mxu0 0.0
    %222 = vmatpush2.msra.mxu0 0.0
    %223 = vmatprep.subr.mxu0 0.0
    %224 = vmatpush2.msra.mxu0 0.0
    %225 = vmatprep.subr.mxu0 0.0
    %226 = vmatpush2.msra.mxu0 0.0
    %227 = vmatprep.subr.mxu0 0.0
    %228 = vmatpush2.msra.mxu0 0.0
    %229 = vmatprep.mubr.f32.mxu0 0.0
    %230 = vmatmul.mubr.f32.gmra.mxu0 %v163
    %v231 = vpop.f32.mrf.mxu0
    %v232 = vadd.f32 0.0, %v231
    %v233 = vpop.f32.mrf.mxu0
    %234 = vdwg.mxu0
    %v235 = vadd.f32 %v123, %v232
    %v236 = vtanh.pop %v235
    %v237 = vmul.f32 %v236, 0.5
    %v238 = vadd.f32 %v237, 0.5
    %v239 = vmul.f32 %v238, 0.0
    %241 = vrot.lane.b32.xlu0 %v236, 96
    %v242 = vpop.permute.xlu0 %241
    %v244 = vmul.f32 %v238, %v242
    %246 = vrot.lane.b32.xlu0 %v244, 16
    %v247 = vpop.permute.xlu0 %246
    %v249 = vadd.f32 %v239, %v247
    %v250 = vtanh.pop %v249
    %252 = vrot.lane.b32.xlu0 %v250, 32
    %v253 = vpop.permute.xlu0 %252
    %v255 = vmul.f32 %v238, %v253
    %257 = vrot.lane.b32.xlu0 %v255, 80
    %v258 = vpop.permute.xlu0 %257
    %v259 = vsel %vm161, %v258, 0
    %261 = vmatprep.subr.mxu0 0.0
    %262 = vmatpush1.msra.mxu0 0.0
    %263 = vmatprep.subr.mxu0 0.0
    %264 = vmatpush1.msra.mxu0 0.0
    %265 = vmatprep.subr.mxu0 0.0
    %266 = vmatpush1.msra.mxu0 0.0
    %267 = vmatprep.subr.mxu0 0.0
    %268 = vmatpush1.msra.mxu0 0.0
    %269 = vmatprep.subr.mxu0 0.0
    %270 = vmatpush1.msra.mxu0 0.0
    %271 = vmatprep.subr.mxu0 0.0
    %272 = vmatpush1.msra.mxu0 0.0
    %273 = vmatprep.subr.mxu0 0.0
    %274 = vmatpush1.msra.mxu0 0.0
    %275 = vmatprep.subr.mxu0 0.0
    %276 = vmatpush1.msra.mxu0 0.0
    %277 = vmatprep.subr.mxu0 0.0
    %278 = vmatpush1.msra.mxu0 0.0
    %279 = vmatprep.subr.mxu0 0.0
    %280 = vmatpush1.msra.mxu0 0.0
    %281 = vmatprep.subr.mxu0 0.0
    %282 = vmatpush1.msra.mxu0 0.0
    %283 = vmatprep.subr.mxu0 0.0
    %284 = vmatpush1.msra.mxu0 0.0
    %285 = vmatprep.subr.mxu0 0.0
    %286 = vmatpush1.msra.mxu0 0.0
    %287 = vmatprep.subr.mxu0 0.0
    %288 = vmatpush1.msra.mxu0 0.0
    %289 = vmatprep.subr.mxu0 0.0
    %290 = vmatpush1.msra.mxu0 %v14
    %291 = vmatprep.subr.mxu0 0.0
    %292 = vmatpush1.msra.mxu0 %v13
    %293 = vmatprep.subr.mxu0 0.0
    %294 = vmatpush2.msra.mxu0 0.0
    %295 = vmatprep.subr.mxu0 0.0
    %296 = vmatpush2.msra.mxu0 0.0
    %297 = vmatprep.subr.mxu0 0.0
    %298 = vmatpush2.msra.mxu0 0.0
    %299 = vmatprep.subr.mxu0 0.0
    %300 = vmatpush2.msra.mxu0 0.0
    %301 = vmatprep.subr.mxu0 0.0
    %302 = vmatpush2.msra.mxu0 0.0
    %303 = vmatprep.subr.mxu0 0.0
    %304 = vmatpush2.msra.mxu0 0.0
    %305 = vmatprep.subr.mxu0 0.0
    %306 = vmatpush2.msra.mxu0 0.0
    %307 = vmatprep.subr.mxu0 0.0
    %308 = vmatpush2.msra.mxu0 0.0
    %309 = vmatprep.subr.mxu0 0.0
    %310 = vmatpush2.msra.mxu0 0.0
    %311 = vmatprep.subr.mxu0 0.0
    %312 = vmatpush2.msra.mxu0 0.0
    %313 = vmatprep.subr.mxu0 0.0
    %314 = vmatpush2.msra.mxu0 0.0
    %315 = vmatprep.subr.mxu0 0.0
    %316 = vmatpush2.msra.mxu0 0.0
    %317 = vmatprep.subr.mxu0 0.0
    %318 = vmatpush2.msra.mxu0 0.0
    %319 = vmatprep.subr.mxu0 0.0
    %320 = vmatpush2.msra.mxu0 0.0
    %321 = vmatprep.subr.mxu0 0.0
    %322 = vmatpush2.msra.mxu0 0.0
    %323 = vmatprep.subr.mxu0 0.0
    %324 = vmatpush2.msra.mxu0 0.0
    %325 = vmatprep.mubr.f32.mxu0 0.0
    %326 = vmatmul.mubr.f32.gmra.mxu0 %v259
    %v327 = vpop.f32.mrf.mxu0
    %v328 = vadd.f32 0.0, %v327
    %v329 = vpop.f32.mrf.mxu0
    %330 = vdwg.mxu0
    %v331 = vadd.f32 %v128, %v328
    %v332 = vtanh.pop %v331
    %v333 = vmul.f32 %v332, 0.5
    %v334 = vadd.f32 %v333, 0.5
    %v335 = vmul.f32 %v334, %v249
    %337 = vrot.lane.b32.xlu0 %v332, 96
    %v338 = vpop.permute.xlu0 %337
    %v340 = vmul.f32 %v334, %v338
    %342 = vrot.lane.b32.xlu0 %v340, 16
    %v343 = vpop.permute.xlu0 %342
    %v345 = vadd.f32 %v335, %v343
    %v346 = vtanh.pop %v345
    %348 = vrot.lane.b32.xlu0 %v346, 32
    %v349 = vpop.permute.xlu0 %348
    %v351 = vmul.f32 %v334, %v349
    %353 = vrot.lane.b32.xlu0 %v351, 80
    %v354 = vpop.permute.xlu0 %353
    %v355 = vsel %vm161, %v354, 0
    %357 = vmatprep.subr.mxu0 0.0
    %358 = vmatpush1.msra.mxu0 0.0
    %359 = vmatprep.subr.mxu0 0.0
    %360 = vmatpush1.msra.mxu0 0.0
    %361 = vmatprep.subr.mxu0 0.0
    %362 = vmatpush1.msra.mxu0 0.0
    %363 = vmatprep.subr.mxu0 0.0
    %364 = vmatpush1.msra.mxu0 0.0
    %365 = vmatprep.subr.mxu0 0.0
    %366 = vmatpush1.msra.mxu0 0.0
    %367 = vmatprep.subr.mxu0 0.0
    %368 = vmatpush1.msra.mxu0 0.0
    %369 = vmatprep.subr.mxu0 0.0
    %370 = vmatpush1.msra.mxu0 0.0
    %371 = vmatprep.subr.mxu0 0.0
    %372 = vmatpush1.msra.mxu0 0.0
    %373 = vmatprep.subr.mxu0 0.0
    %374 = vmatpush1.msra.mxu0 0.0
    %375 = vmatprep.subr.mxu0 0.0
    %376 = vmatpush1.msra.mxu0 0.0
    %377 = vmatprep.subr.mxu0 0.0
    %378 = vmatpush1.msra.mxu0 0.0
    %379 = vmatprep.subr.mxu0 0.0
    %380 = vmatpush1.msra.mxu0 0.0
    %381 = vmatprep.subr.mxu0 0.0
    %382 = vmatpush1.msra.mxu0 0.0
    %383 = vmatprep.subr.mxu0 0.0
    %384 = vmatpush1.msra.mxu0 0.0
    %385 = vmatprep.subr.mxu0 0.0
    %386 = vmatpush1.msra.mxu0 %v14
    %387 = vmatprep.subr.mxu0 0.0
    %388 = vmatpush1.msra.mxu0 %v13
    %389 = vmatprep.subr.mxu0 0.0
    %390 = vmatpush2.msra.mxu0 0.0
    %391 = vmatprep.subr.mxu0 0.0
    %392 = vmatpush2.msra.mxu0 0.0
    %393 = vmatprep.subr.mxu0 0.0
    %394 = vmatpush2.msra.mxu0 0.0
    %395 = vmatprep.subr.mxu0 0.0
    %396 = vmatpush2.msra.mxu0 0.0
    %397 = vmatprep.subr.mxu0 0.0
    %398 = vmatpush2.msra.mxu0 0.0
    %399 = vmatprep.subr.mxu0 0.0
    %400 = vmatpush2.msra.mxu0 0.0
    %401 = vmatprep.subr.mxu0 0.0
    %402 = vmatpush2.msra.mxu0 0.0
    %403 = vmatprep.subr.mxu0 0.0
    %404 = vmatpush2.msra.mxu0 0.0
    %405 = vmatprep.subr.mxu0 0.0
    %406 = vmatpush2.msra.mxu0 0.0
    %407 = vmatprep.subr.mxu0 0.0
    %408 = vmatpush2.msra.mxu0 0.0
    %409 = vmatprep.subr.mxu0 0.0
    %410 = vmatpush2.msra.mxu0 0.0
    %411 = vmatprep.subr.mxu0 0.0
    %412 = vmatpush2.msra.mxu0 0.0
    %413 = vmatprep.subr.mxu0 0.0
    %414 = vmatpush2.msra.mxu0 0.0
    %415 = vmatprep.subr.mxu0 0.0
    %416 = vmatpush2.msra.mxu0 0.0
    %417 = vmatprep.subr.mxu0 0.0
    %418 = vmatpush2.msra.mxu0 0.0
    %419 = vmatprep.subr.mxu0 0.0
    %420 = vmatpush2.msra.mxu0 0.0
    %421 = vmatprep.mubr.f32.mxu0 0.0
    %422 = vmatmul.mubr.f32.gmra.mxu0 %v355
    %v423 = vpop.f32.mrf.mxu0
    %v424 = vadd.f32 0.0, %v423
    %v425 = vpop.f32.mrf.mxu0
    %426 = vdwg.mxu0
    %v427 = vadd.f32 %v133, %v424
    %v428 = vtanh.pop %v427
    %v429 = vmul.f32 %v428, 0.5
    %v430 = vadd.f32 %v429, 0.5
    %v431 = vmul.f32 %v430, %v345
    %433 = vrot.lane.b32.xlu0 %v428, 96
    %v434 = vpop.permute.xlu0 %433
    %v436 = vmul.f32 %v430, %v434
    %438 = vrot.lane.b32.xlu0 %v436, 16
    %v439 = vpop.permute.xlu0 %438
    %v441 = vadd.f32 %v431, %v439
    %v442 = vtanh.pop %v441
    %444 = vrot.lane.b32.xlu0 %v442, 32
    %v445 = vpop.permute.xlu0 %444
    %v447 = vmul.f32 %v430, %v445
    %449 = vrot.lane.b32.xlu0 %v447, 80
    %v450 = vpop.permute.xlu0 %449
    %v451 = vsel %vm161, %v450, 0
    %453 = vmatprep.subr.mxu0 0.0
    %454 = vmatpush1.msra.mxu0 0.0
    %455 = vmatprep.subr.mxu0 0.0
    %456 = vmatpush1.msra.mxu0 0.0
    %457 = vmatprep.subr.mxu0 0.0
    %458 = vmatpush1.msra.mxu0 0.0
    %459 = vmatprep.subr.mxu0 0.0
    %460 = vmatpush1.msra.mxu0 0.0
    %461 = vmatprep.subr.mxu0 0.0
    %462 = vmatpush1.msra.mxu0 0.0
    %463 = vmatprep.subr.mxu0 0.0
    %464 = vmatpush1.msra.mxu0 0.0
    %465 = vmatprep.subr.mxu0 0.0
    %466 = vmatpush1.msra.mxu0 0.0
    %467 = vmatprep.subr.mxu0 0.0
    %468 = vmatpush1.msra.mxu0 0.0
    %469 = vmatprep.subr.mxu0 0.0
    %470 = vmatpush1.msra.mxu0 0.0
    %471 = vmatprep.subr.mxu0 0.0
    %472 = vmatpush1.msra.mxu0 0.0
    %473 = vmatprep.subr.mxu0 0.0
    %474 = vmatpush1.msra.mxu0 0.0
    %475 = vmatprep.subr.mxu0 0.0
    %476 = vmatpush1.msra.mxu0 0.0
    %477 = vmatprep.subr.mxu0 0.0
    %478 = vmatpush1.msra.mxu0 0.0
    %479 = vmatprep.subr.mxu0 0.0
    %480 = vmatpush1.msra.mxu0 0.0
    %481 = vmatprep.subr.mxu0 0.0
    %482 = vmatpush1.msra.mxu0 %v14
    %483 = vmatprep.subr.mxu0 0.0
    %484 = vmatpush1.msra.mxu0 %v13
    %485 = vmatprep.subr.mxu0 0.0
    %486 = vmatpush2.msra.mxu0 0.0
    %487 = vmatprep.subr.mxu0 0.0
    %488 = vmatpush2.msra.mxu0 0.0
    %489 = vmatprep.subr.mxu0 0.0
    %490 = vmatpush2.msra.mxu0 0.0
    %491 = vmatprep.subr.mxu0 0.0
    %492 = vmatpush2.msra.mxu0 0.0
    %493 = vmatprep.subr.mxu0 0.0
    %494 = vmatpush2.msra.mxu0 0.0
    %495 = vmatprep.subr.mxu0 0.0
    %496 = vmatpush2.msra.mxu0 0.0
    %497 = vmatprep.subr.mxu0 0.0
    %498 = vmatpush2.msra.mxu0 0.0
    %499 = vmatprep.subr.mxu0 0.0
    %500 = vmatpush2.msra.mxu0 0.0
    %501 = vmatprep.subr.mxu0 0.0
    %502 = vmatpush2.msra.mxu0 0.0
    %503 = vmatprep.subr.mxu0 0.0
    %504 = vmatpush2.msra.mxu0 0.0
    %505 = vmatprep.subr.mxu0 0.0
    %506 = vmatpush2.msra.mxu0 0.0
    %507 = vmatprep.subr.mxu0 0.0
    %508 = vmatpush2.msra.mxu0 0.0
    %509 = vmatprep.subr.mxu0 0.0
    %510 = vmatpush2.msra.mxu0 0.0
    %511 = vmatprep.subr.mxu0 0.0
    %512 = vmatpush2.msra.mxu0 0.0
    %513 = vmatprep.subr.mxu0 0.0
    %514 = vmatpush2.msra.mxu0 0.0
    %515 = vmatprep.subr.mxu0 0.0
    %516 = vmatpush2.msra.mxu0 0.0
    %517 = vmatprep.mubr.f32.mxu0 0.0
    %518 = vmatmul.mubr.f32.gmra.mxu0 %v451
    %v519 = vpop.f32.mrf.mxu0
    %v520 = vadd.f32 0.0, %v519
    %v521 = vpop.f32.mrf.mxu0
    %522 = vdwg.mxu0
    %v523 = vadd.f32 %v138, %v520
    %v524 = vtanh.pop %v523
    %v525 = vmul.f32 %v524, 0.5
    %v526 = vadd.f32 %v525, 0.5
    %v527 = vmul.f32 %v526, %v441
    %529 = vrot.lane.b32.xlu0 %v524, 96
    %v530 = vpop.permute.xlu0 %529
    %v532 = vmul.f32 %v526, %v530
    %534 = vrot.lane.b32.xlu0 %v532, 16
    %v535 = vpop.permute.xlu0 %534
    %v537 = vadd.f32 %v527, %v535
    %v538 = vtanh.pop %v537
    %540 = vrot.lane.b32.xlu0 %v538, 32
    %v541 = vpop.permute.xlu0 %540
    %v543 = vmul.f32 %v526, %v541
    %545 = vrot.lane.b32.xlu0 %v543, 80
    %v546 = vpop.permute.xlu0 %545
    %v547 = vsel %vm161, %v546, 0
    %549 = vmatprep.subr.mxu0 0.0
    %550 = vmatpush1.msra.mxu0 0.0
    %551 = vmatprep.subr.mxu0 0.0
    %552 = vmatpush1.msra.mxu0 0.0
    %553 = vmatprep.subr.mxu0 0.0
    %554 = vmatpush1.msra.mxu0 0.0
    %555 = vmatprep.subr.mxu0 0.0
    %556 = vmatpush1.msra.mxu0 0.0
    %557 = vmatprep.subr.mxu0 0.0
    %558 = vmatpush1.msra.mxu0 0.0
    %559 = vmatprep.subr.mxu0 0.0
    %560 = vmatpush1.msra.mxu0 0.0
    %561 = vmatprep.subr.mxu0 0.0
    %562 = vmatpush1.msra.mxu0 0.0
    %563 = vmatprep.subr.mxu0 0.0
    %564 = vmatpush1.msra.mxu0 0.0
    %565 = vmatprep.subr.mxu0 0.0
    %566 = vmatpush1.msra.mxu0 0.0
    %567 = vmatprep.subr.mxu0 0.0
    %568 = vmatpush1.msra.mxu0 0.0
    %569 = vmatprep.subr.mxu0 0.0
    %570 = vmatpush1.msra.mxu0 0.0
    %571 = vmatprep.subr.mxu0 0.0
    %572 = vmatpush1.msra.mxu0 0.0
    %573 = vmatprep.subr.mxu0 0.0
    %574 = vmatpush1.msra.mxu0 0.0
    %575 = vmatprep.subr.mxu0 0.0
    %576 = vmatpush1.msra.mxu0 0.0
    %577 = vmatprep.subr.mxu0 0.0
    %578 = vmatpush1.msra.mxu0 %v14
    %579 = vmatprep.subr.mxu0 0.0
    %580 = vmatpush1.msra.mxu0 %v13
    %581 = vmatprep.subr.mxu0 0.0
    %582 = vmatpush2.msra.mxu0 0.0
    %583 = vmatprep.subr.mxu0 0.0
    %584 = vmatpush2.msra.mxu0 0.0
    %585 = vmatprep.subr.mxu0 0.0
    %586 = vmatpush2.msra.mxu0 0.0
    %587 = vmatprep.subr.mxu0 0.0
    %588 = vmatpush2.msra.mxu0 0.0
    %589 = vmatprep.subr.mxu0 0.0
    %590 = vmatpush2.msra.mxu0 0.0
    %591 = vmatprep.subr.mxu0 0.0
    %592 = vmatpush2.msra.mxu0 0.0
    %593 = vmatprep.subr.mxu0 0.0
    %594 = vmatpush2.msra.mxu0 0.0
    %595 = vmatprep.subr.mxu0 0.0
    %596 = vmatpush2.msra.mxu0 0.0
    %597 = vmatprep.subr.mxu0 0.0
    %598 = vmatpush2.msra.mxu0 0.0
    %599 = vmatprep.subr.mxu0 0.0
    %600 = vmatpush2.msra.mxu0 0.0
    %601 = vmatprep.subr.mxu0 0.0
    %602 = vmatpush2.msra.mxu0 0.0
    %603 = vmatprep.subr.mxu0 0.0
    %604 = vmatpush2.msra.mxu0 0.0
    %605 = vmatprep.subr.mxu0 0.0
    %606 = vmatpush2.msra.mxu0 0.0
    %607 = vmatprep.subr.mxu0 0.0
    %608 = vmatpush2.msra.mxu0 0.0
    %609 = vmatprep.subr.mxu0 0.0
    %610 = vmatpush2.msra.mxu0 0.0
    %611 = vmatprep.subr.mxu0 0.0
    %612 = vmatpush2.msra.mxu0 0.0
    %613 = vmatprep.mubr.f32.mxu0 0.0
    %614 = vmatmul.mubr.f32.gmra.mxu0 %v547
    %v615 = vpop.f32.mrf.mxu0
    %v616 = vadd.f32 0.0, %v615
    %v617 = vpop.f32.mrf.mxu0
    %618 = vdwg.mxu0
    %v619 = vadd.f32 %v143, %v616
    %v620 = vtanh.pop %v619
    %v621 = vmul.f32 %v620, 0.5
    %v622 = vadd.f32 %v621, 0.5
    %v623 = vmul.f32 %v622, %v537
    %625 = vrot.lane.b32.xlu0 %v620, 96
    %v626 = vpop.permute.xlu0 %625
    %v628 = vmul.f32 %v622, %v626
    %630 = vrot.lane.b32.xlu0 %v628, 16
    %v631 = vpop.permute.xlu0 %630
    %v633 = vadd.f32 %v623, %v631
    %v634 = vtanh.pop %v633
    %636 = vrot.lane.b32.xlu0 %v634, 32
    %v637 = vpop.permute.xlu0 %636
    %v639 = vmul.f32 %v622, %v637
    %641 = vrot.lane.b32.xlu0 %v639, 80
    %v642 = vpop.permute.xlu0 %641
    %v643 = vsel %vm161, %v642, 0
    %645 = vmatprep.subr.mxu0 0.0
    %646 = vmatpush1.msra.mxu0 0.0
    %647 = vmatprep.subr.mxu0 0.0
    %648 = vmatpush1.msra.mxu0 0.0
    %649 = vmatprep.subr.mxu0 0.0
    %650 = vmatpush1.msra.mxu0 0.0
    %651 = vmatprep.subr.mxu0 0.0
    %652 = vmatpush1.msra.mxu0 0.0
    %653 = vmatprep.subr.mxu0 0.0
    %654 = vmatpush1.msra.mxu0 0.0
    %655 = vmatprep.subr.mxu0 0.0
    %656 = vmatpush1.msra.mxu0 0.0
    %657 = vmatprep.subr.mxu0 0.0
    %658 = vmatpush1.msra.mxu0 0.0
    %659 = vmatprep.subr.mxu0 0.0
    %660 = vmatpush1.msra.mxu0 0.0
    %661 = vmatprep.subr.mxu0 0.0
    %662 = vmatpush1.msra.mxu0 0.0
    %663 = vmatprep.subr.mxu0 0.0
    %664 = vmatpush1.msra.mxu0 0.0
    %665 = vmatprep.subr.mxu0 0.0
    %666 = vmatpush1.msra.mxu0 0.0
    %667 = vmatprep.subr.mxu0 0.0
    %668 = vmatpush1.msra.mxu0 0.0
    %669 = vmatprep.subr.mxu0 0.0
    %670 = vmatpush1.msra.mxu0 0.0
    %671 = vmatprep.subr.mxu0 0.0
    %672 = vmatpush1.msra.mxu0 0.0
    %673 = vmatprep.subr.mxu0 0.0
    %674 = vmatpush1.msra.mxu0 %v14
    %675 = vmatprep.subr.mxu0 0.0
    %676 = vmatpush1.msra.mxu0 %v13
    %677 = vmatprep.subr.mxu0 0.0
    %678 = vmatpush2.msra.mxu0 0.0
    %679 = vmatprep.subr.mxu0 0.0
    %680 = vmatpush2.msra.mxu0 0.0
    %681 = vmatprep.subr.mxu0 0.0
    %682 = vmatpush2.msra.mxu0 0.0
    %683 = vmatprep.subr.mxu0 0.0
    %684 = vmatpush2.msra.mxu0 0.0
    %685 = vmatprep.subr.mxu0 0.0
    %686 = vmatpush2.msra.mxu0 0.0
    %687 = vmatprep.subr.mxu0 0.0
    %688 = vmatpush2.msra.mxu0 0.0
    %689 = vmatprep.subr.mxu0 0.0
    %690 = vmatpush2.msra.mxu0 0.0
    %691 = vmatprep.subr.mxu0 0.0
    %692 = vmatpush2.msra.mxu0 0.0
    %693 = vmatprep.subr.mxu0 0.0
    %694 = vmatpush2.msra.mxu0 0.0
    %695 = vmatprep.subr.mxu0 0.0
    %696 = vmatpush2.msra.mxu0 0.0
    %697 = vmatprep.subr.mxu0 0.0
    %698 = vmatpush2.msra.mxu0 0.0
    %699 = vmatprep.subr.mxu0 0.0
    %700 = vmatpush2.msra.mxu0 0.0
    %701 = vmatprep.subr.mxu0 0.0
    %702 = vmatpush2.msra.mxu0 0.0
    %703 = vmatprep.subr.mxu0 0.0
    %704 = vmatpush2.msra.mxu0 0.0
    %705 = vmatprep.subr.mxu0 0.0
    %706 = vmatpush2.msra.mxu0 0.0
    %707 = vmatprep.subr.mxu0 0.0
    %708 = vmatpush2.msra.mxu0 0.0
    %709 = vmatprep.mubr.f32.mxu0 0.0
    %710 = vmatmul.mubr.f32.gmra.mxu0 %v643
    %v711 = vpop.f32.mrf.mxu0
    %v712 = vadd.f32 0.0, %v711
    %v713 = vpop.f32.mrf.mxu0
    %714 = vdwg.mxu0
    %v715 = vadd.f32 %v148, %v712
    %v716 = vtanh.pop %v715
    %v717 = vmul.f32 %v716, 0.5
    %v718 = vadd.f32 %v717, 0.5
    %v719 = vmul.f32 %v718, %v633
    %721 = vrot.lane.b32.xlu0 %v716, 96
    %v722 = vpop.permute.xlu0 %721
    %v724 = vmul.f32 %v718, %v722
    %726 = vrot.lane.b32.xlu0 %v724, 16
    %v727 = vpop.permute.xlu0 %726
    %v729 = vadd.f32 %v719, %v727
    %v730 = vtanh.pop %v729
    %732 = vrot.lane.b32.xlu0 %v730, 32
    %v733 = vpop.permute.xlu0 %732
    %v735 = vmul.f32 %v718, %v733
    %737 = vrot.lane.b32.xlu0 %v735, 80
    %v738 = vpop.permute.xlu0 %737
    %v739 = vsel %vm161, %v738, 0
    %741 = vmatprep.subr.mxu0 0.0
    %742 = vmatpush1.msra.mxu0 0.0
    %743 = vmatprep.subr.mxu0 0.0
    %744 = vmatpush1.msra.mxu0 0.0
    %745 = vmatprep.subr.mxu0 0.0
    %746 = vmatpush1.msra.mxu0 0.0
    %747 = vmatprep.subr.mxu0 0.0
    %748 = vmatpush1.msra.mxu0 0.0
    %749 = vmatprep.subr.mxu0 0.0
    %750 = vmatpush1.msra.mxu0 0.0
    %751 = vmatprep.subr.mxu0 0.0
    %752 = vmatpush1.msra.mxu0 0.0
    %753 = vmatprep.subr.mxu0 0.0
    %754 = vmatpush1.msra.mxu0 0.0
    %755 = vmatprep.subr.mxu0 0.0
    %756 = vmatpush1.msra.mxu0 0.0
    %757 = vmatprep.subr.mxu0 0.0
    %758 = vmatpush1.msra.mxu0 0.0
    %759 = vmatprep.subr.mxu0 0.0
    %760 = vmatpush1.msra.mxu0 0.0
    %761 = vmatprep.subr.mxu0 0.0
    %762 = vmatpush1.msra.mxu0 0.0
    %763 = vmatprep.subr.mxu0 0.0
    %764 = vmatpush1.msra.mxu0 0.0
    %765 = vmatprep.subr.mxu0 0.0
    %766 = vmatpush1.msra.mxu0 0.0
    %767 = vmatprep.subr.mxu0 0.0
    %768 = vmatpush1.msra.mxu0 0.0
    %769 = vmatprep.subr.mxu0 0.0
    %770 = vmatpush1.msra.mxu0 %v14
    %771 = vmatprep.subr.mxu0 0.0
    %772 = vmatpush1.msra.mxu0 %v13
    %773 = vmatprep.subr.mxu0 0.0
    %774 = vmatpush2.msra.mxu0 0.0
    %775 = vmatprep.subr.mxu0 0.0
    %776 = vmatpush2.msra.mxu0 0.0
    %777 = vmatprep.subr.mxu0 0.0
    %778 = vmatpush2.msra.mxu0 0.0
    %779 = vmatprep.subr.mxu0 0.0
    %780 = vmatpush2.msra.mxu0 0.0
    %781 = vmatprep.subr.mxu0 0.0
    %782 = vmatpush2.msra.mxu0 0.0
    %783 = vmatprep.subr.mxu0 0.0
    %784 = vmatpush2.msra.mxu0 0.0
    %785 = vmatprep.subr.mxu0 0.0
    %786 = vmatpush2.msra.mxu0 0.0
    %787 = vmatprep.subr.mxu0 0.0
    %788 = vmatpush2.msra.mxu0 0.0
    %789 = vmatprep.subr.mxu0 0.0
    %790 = vmatpush2.msra.mxu0 0.0
    %791 = vmatprep.subr.mxu0 0.0
    %792 = vmatpush2.msra.mxu0 0.0
    %793 = vmatprep.subr.mxu0 0.0
    %794 = vmatpush2.msra.mxu0 0.0
    %795 = vmatprep.subr.mxu0 0.0
    %796 = vmatpush2.msra.mxu0 0.0
    %797 = vmatprep.subr.mxu0 0.0
    %798 = vmatpush2.msra.mxu0 0.0
    %799 = vmatprep.subr.mxu0 0.0
    %800 = vmatpush2.msra.mxu0 0.0
    %801 = vmatprep.subr.mxu0 0.0
    %802 = vmatpush2.msra.mxu0 0.0
    %803 = vmatprep.subr.mxu0 0.0
    %804 = vmatpush2.msra.mxu0 0.0
    %805 = vmatprep.mubr.f32.mxu0 0.0
    %806 = vmatmul.mubr.f32.gmra.mxu0 %v739
    %v807 = vpop.f32.mrf.mxu0
    %v808 = vadd.f32 0.0, %v807
    %v809 = vpop.f32.mrf.mxu0
    %810 = vdwg.mxu0
    %v811 = vadd.f32 %v153, %v808
    %v812 = vtanh.pop %v811
    %v813 = vmul.f32 %v812, 0.5
    %v814 = vadd.f32 %v813, 0.5
    %v815 = vmul.f32 %v814, %v729
    %817 = vrot.lane.b32.xlu0 %v812, 96
    %v818 = vpop.permute.xlu0 %817
    %v820 = vmul.f32 %v814, %v818
    %822 = vrot.lane.b32.xlu0 %v820, 16
    %v823 = vpop.permute.xlu0 %822
    %v825 = vadd.f32 %v815, %v823
    %v826 = vtanh.pop %v825
    %828 = vrot.lane.b32.xlu0 %v826, 32
    %v829 = vpop.permute.xlu0 %828
    %v831 = vmul.f32 %v814, %v829
    %833 = vrot.lane.b32.xlu0 %v831, 80
    %v834 = vpop.permute.xlu0 %833
    %v835 = vsel %vm161, %v834, 0
    %837 = vmatprep.subr.mxu0 0.0
    %838 = vmatpush1.msra.mxu0 0.0
    %839 = vmatprep.subr.mxu0 0.0
    %840 = vmatpush1.msra.mxu0 0.0
    %841 = vmatprep.subr.mxu0 0.0
    %842 = vmatpush1.msra.mxu0 0.0
    %843 = vmatprep.subr.mxu0 0.0
    %844 = vmatpush1.msra.mxu0 0.0
    %845 = vmatprep.subr.mxu0 0.0
    %846 = vmatpush1.msra.mxu0 0.0
    %847 = vmatprep.subr.mxu0 0.0
    %848 = vmatpush1.msra.mxu0 0.0
    %849 = vmatprep.subr.mxu0 0.0
    %850 = vmatpush1.msra.mxu0 0.0
    %851 = vmatprep.subr.mxu0 0.0
    %852 = vmatpush1.msra.mxu0 0.0
    %853 = vmatprep.subr.mxu0 0.0
    %854 = vmatpush1.msra.mxu0 0.0
    %855 = vmatprep.subr.mxu0 0.0
    %856 = vmatpush1.msra.mxu0 0.0
    %857 = vmatprep.subr.mxu0 0.0
    %858 = vmatpush1.msra.mxu0 0.0
    %859 = vmatprep.subr.mxu0 0.0
    %860 = vmatpush1.msra.mxu0 0.0
    %861 = vmatprep.subr.mxu0 0.0
    %862 = vmatpush1.msra.mxu0 0.0
    %863 = vmatprep.subr.mxu0 0.0
    %864 = vmatpush1.msra.mxu0 0.0
    %865 = vmatprep.subr.mxu0 0.0
    %866 = vmatpush1.msra.mxu0 %v14
    %867 = vmatprep.subr.mxu0 0.0
    %868 = vmatpush1.msra.mxu0 %v13
    %869 = vmatprep.subr.mxu0 0.0
    %870 = vmatpush2.msra.mxu0 0.0
    %871 = vmatprep.subr.mxu0 0.0
    %872 = vmatpush2.msra.mxu0 0.0
    %873 = vmatprep.subr.mxu0 0.0
    %874 = vmatpush2.msra.mxu0 0.0
    %875 = vmatprep.subr.mxu0 0.0
    %876 = vmatpush2.msra.mxu0 0.0
    %877 = vmatprep.subr.mxu0 0.0
    %878 = vmatpush2.msra.mxu0 0.0
    %879 = vmatprep.subr.mxu0 0.0
    %880 = vmatpush2.msra.mxu0 0.0
    %881 = vmatprep.subr.mxu0 0.0
    %882 = vmatpush2.msra.mxu0 0.0
    %883 = vmatprep.subr.mxu0 0.0
    %884 = vmatpush2.msra.mxu0 0.0
    %885 = vmatprep.subr.mxu0 0.0
    %886 = vmatpush2.msra.mxu0 0.0
    %887 = vmatprep.subr.mxu0 0.0
    %888 = vmatpush2.msra.mxu0 0.0
    %889 = vmatprep.subr.mxu0 0.0
    %890 = vmatpush2.msra.mxu0 0.0
    %891 = vmatprep.subr.mxu0 0.0
    %892 = vmatpush2.msra.mxu0 0.0
    %893 = vmatprep.subr.mxu0 0.0
    %894 = vmatpush2.msra.mxu0 0.0
    %895 = vmatprep.subr.mxu0 0.0
    %896 = vmatpush2.msra.mxu0 0.0
    %897 = vmatprep.subr.mxu0 0.0
    %898 = vmatpush2.msra.mxu0 0.0
    %899 = vmatprep.subr.mxu0 0.0
    %900 = vmatpush2.msra.mxu0 0.0
    %901 = vmatprep.mubr.f32.mxu0 0.0
    %902 = vmatmul.mubr.f32.gmra.mxu0 %v835
    %v903 = vpop.f32.mrf.mxu0
    %v904 = vadd.f32 0.0, %v903
    %v905 = vpop.f32.mrf.mxu0
    %906 = vdwg.mxu0
    %v907 = vadd.f32 %v158, %v904
    %v908 = vtanh.pop %v907
    %v909 = vmul.f32 %v908, 0.5
    %v910 = vadd.f32 %v909, 0.5
    %v911 = vmul.f32 %v910, %v825
    %913 = vrot.lane.b32.xlu0 %v908, 96
    %v914 = vpop.permute.xlu0 %913
    %v916 = vmul.f32 %v910, %v914
    %918 = vrot.lane.b32.xlu0 %v916, 16
    %v919 = vpop.permute.xlu0 %918
    %v921 = vadd.f32 %v911, %v919
    %v922 = vtanh.pop %v921
    %924 = vrot.lane.b32.xlu0 %v922, 32
    %v925 = vpop.permute.xlu0 %924
    %v927 = vmul.f32 %v910, %v925
    %v928 = vlaneseq
    %v929 = vshrl.u32 %v928, 7
    %v930 = vsub.s32 0, %v929
    %v931 = vrot.slane %v18, %v930
    %933 = vrot.lane.b32.xlu0 %v927, 80
    %v934 = vpop.permute.xlu0 %933
    %v935 = vsel %vm161, %v934, 0
    %937 = vmatprep.subr.mxu0 0.0
    %938 = vmatpush1.msra.mxu0 0.0
    %939 = vmatprep.subr.mxu0 0.0
    %940 = vmatpush1.msra.mxu0 0.0
    %941 = vmatprep.subr.mxu0 0.0
    %942 = vmatpush1.msra.mxu0 0.0
    %943 = vmatprep.subr.mxu0 0.0
    %944 = vmatpush1.msra.mxu0 0.0
    %945 = vmatprep.subr.mxu0 0.0
    %946 = vmatpush1.msra.mxu0 0.0
    %947 = vmatprep.subr.mxu0 0.0
    %948 = vmatpush1.msra.mxu0 0.0
    %949 = vmatprep.subr.mxu0 0.0
    %950 = vmatpush1.msra.mxu0 0.0
    %951 = vmatprep.subr.mxu0 0.0
    %952 = vmatpush1.msra.mxu0 0.0
    %953 = vmatprep.subr.mxu0 0.0
    %954 = vmatpush1.msra.mxu0 0.0
    %955 = vmatprep.subr.mxu0 0.0
    %956 = vmatpush1.msra.mxu0 0.0
    %957 = vmatprep.subr.mxu0 0.0
    %958 = vmatpush1.msra.mxu0 0.0
    %959 = vmatprep.subr.mxu0 0.0
    %960 = vmatpush1.msra.mxu0 0.0
    %961 = vmatprep.subr.mxu0 0.0
    %962 = vmatpush1.msra.mxu0 0.0
    %963 = vmatprep.subr.mxu0 0.0
    %964 = vmatpush1.msra.mxu0 0.0
    %965 = vmatprep.subr.mxu0 0.0
    %966 = vmatpush1.msra.mxu0 %v17
    %967 = vmatprep.subr.mxu0 0.0
    %968 = vmatpush1.msra.mxu0 %v16
    %969 = vmatprep.subr.mxu0 0.0
    %970 = vmatpush2.msra.mxu0 0.0
    %971 = vmatprep.subr.mxu0 0.0
    %972 = vmatpush2.msra.mxu0 0.0
    %973 = vmatprep.subr.mxu0 0.0
    %974 = vmatpush2.msra.mxu0 0.0
    %975 = vmatprep.subr.mxu0 0.0
    %976 = vmatpush2.msra.mxu0 0.0
    %977 = vmatprep.subr.mxu0 0.0
    %978 = vmatpush2.msra.mxu0 0.0
    %979 = vmatprep.subr.mxu0 0.0
    %980 = vmatpush2.msra.mxu0 0.0
    %981 = vmatprep.subr.mxu0 0.0
    %982 = vmatpush2.msra.mxu0 0.0
    %983 = vmatprep.subr.mxu0 0.0
    %984 = vmatpush2.msra.mxu0 0.0
    %985 = vmatprep.subr.mxu0 0.0
    %986 = vmatpush2.msra.mxu0 0.0
    %987 = vmatprep.subr.mxu0 0.0
    %988 = vmatpush2.msra.mxu0 0.0
    %989 = vmatprep.subr.mxu0 0.0
    %990 = vmatpush2.msra.mxu0 0.0
    %991 = vmatprep.subr.mxu0 0.0
    %992 = vmatpush2.msra.mxu0 0.0
    %993 = vmatprep.subr.mxu0 0.0
    %994 = vmatpush2.msra.mxu0 0.0
    %995 = vmatprep.subr.mxu0 0.0
    %996 = vmatpush2.msra.mxu0 0.0
    %997 = vmatprep.subr.mxu0 0.0
    %998 = vmatpush2.msra.mxu0 0.0
    %999 = vmatprep.subr.mxu0 0.0
    %1000 = vmatpush2.msra.mxu0 0.0
    %1001 = vmatprep.mubr.f32.mxu0 0.0
    %1002 = vmatmul.mubr.f32.gmra.mxu0 %v935
    %v1003 = vpop.f32.mrf.mxu0
    %v1004 = vadd.f32 %v931, %v1003
    %v1005 = vpop.f32.mrf.mxu0
    %1006 = vdwg.mxu0
    %vm1007 = vcmask 523264
    %1008 = vst.msk [vmem:[#allocation2] sm:$0xff] %vm1007, %v1004
    // Predicated region
    $region10: #{tpu_custom_call.1} parent=1 // pred_check
      _
    $region11: #{tpu_custom_call.1} parent=1 // pred_check_branch
      %1010 = sbr.rel (0) target = $region13
    $region12: #{tpu_custom_call.1} parent=1 // pred_region
      %s1012 = ssub.s32 128, 128
      %1013 = vsyncadd [#allocation3], %s1012
      %s1015 = sshll.u32 [#allocation2], 4
      %s1016 = int_to_ptr.vmem [resolvable:$true] %s1015
      %1018 = dma.vmem_to_hbm [thread:$0]  %s1016, 128, %s2, [#allocation3]
    $region13: #{tpu_custom_call.1} parent=1 // pred_fallthru
      _
    // Predicated region
    $region14: #{tpu_custom_call.1} parent=1 // pred_check
      _
    $region15: #{tpu_custom_call.1} parent=1 // pred_check_branch
      %1020 = sbr.rel (0) target = $region17
    $region16: #{tpu_custom_call.1} parent=1 // pred_region
      %1021 = dma.done [#allocation3], 128
    $region17: #{tpu_custom_call.1} parent=1 // pred_fallthru
      _
    %1022 = vsyncpa [#allocation3], 1

</llo_original>
